<compile_context>
chip_gen: v7x
topology: tpu7x:2x2x1
jax: 0.10.0
libtpu: 0.0.40
codegen_flags: <defaults>
</compile_context>

<pallas_src>
import functools

import jax
import jax.numpy as jnp
from jax.experimental import pallas as pl
from jax.experimental.pallas import tpu as pltpu


def _round_up(x, m):
    return ((x + m - 1) // m) * m


def _choose_tiles(n):
    """Return (n_pad, tq, tk): lane/sublane friendly, VMEM-safe on v7x (64 MiB)."""
    n_pad = _round_up(n, 128)              # lane-dense logits / outputs
    if n_pad <= 512:
        return n_pad, n_pad, n_pad         # single query tile, single KV tile
    n_pad = _round_up(n, 256)
    return n_pad, 256, 256                 # flash tiles; VMEM use N-independent


# ---------------------------------------------------------------------------
# Pass 1: fused QKV projection (computed once per token)
# ---------------------------------------------------------------------------
def _qkv_proj_kernel(x_ref, w_ref, o_ref):
    # x_ref: (1, TN, C)   w_ref: (C, 3C)   o_ref: (1, TN, 3C)
    o_ref[0] = jnp.dot(x_ref[0], w_ref[...],
                       preferred_element_type=jnp.float32).astype(o_ref.dtype)


# ---------------------------------------------------------------------------
# Pass 2: flash attention (online softmax over KV tiles) + output projection
# ---------------------------------------------------------------------------
def _flash_attn_kernel(q_ref, k_ref, v_ref, wp_ref, bp_ref, o_ref,
                       qh_sc, m_sc, l_sc, acc_sc, *,
                       num_heads, n_real, mask_keys):
    ki = pl.program_id(2)
    h = num_heads
    _, tq, c = q_ref.shape
    tk = k_ref.shape[1]
    dh = c // h
    in_dtype = q_ref.dtype

    @pl.when(ki == 0)
    def _():
        m_sc[...] = jnp.full_like(m_sc, -jnp.inf)
        l_sc[...] = jnp.zeros_like(l_sc)
        acc_sc[...] = jnp.zeros_like(acc_sc)
        # Head-split the (pre-scaled) query tile once per query tile.
        qh_sc[...] = q_ref[0].reshape(tq, h, dh).transpose(1, 0, 2)

    kh = k_ref[0].reshape(tk, h, dh).transpose(1, 0, 2)          # (H, TK, Dh)
    vh = v_ref[0].reshape(tk, h, dh).transpose(1, 0, 2)          # (H, TK, Dh)

    # Logits (scale already folded into the Q weight): (H, TQ, TK), f32 acc.
    s = jnp.einsum('hqd,hkd->hqk', qh_sc[...], kh,
                   preferred_element_type=jnp.float32)

    if mask_keys:
        key_idx = ki * tk + jax.lax.broadcasted_iota(jnp.int32, (1, 1, tk), 2)
        s = jnp.where(key_idx < n_real, s, -1e30)

    # Online softmax update (normalization deferred to the finalize step).
    m_prev = m_sc[...]
    m_new = jnp.maximum(m_prev, jnp.max(s, axis=-1, keepdims=True))
    alpha = jnp.exp(m_prev - m_new)                              # (H, TQ, 1)
    p = jnp.exp(s - m_new)                                       # (H, TQ, TK)
    l_sc[...] = alpha * l_sc[...] + jnp.sum(p, axis=-1, keepdims=True)
    acc_sc[...] = alpha * acc_sc[...] + jnp.einsum(
        'hqk,hkd->hqd', p.astype(in_dtype), vh,
        preferred_element_type=jnp.float32)                      # (H, TQ, Dh)
    m_sc[...] = m_new

    @pl.when(ki == pl.num_programs(2) - 1)
    def _():
        # Exact deferred normalization on the small (H, TQ, Dh) accumulator.
        out_h = acc_sc[...] / l_sc[...]
        # Fused head-concat + output projection:
        #   out[q, c] = sum_h out_h[h] @ w_proj[h],  w_proj passed as (H, Dh, C)
        proj = jnp.einsum('hqd,hdc->hqc', out_h.astype(in_dtype), wp_ref[...],
                          preferred_element_type=jnp.float32)    # (H, TQ, C)
        o_ref[0] = (jnp.sum(proj, axis=0) + bp_ref[...]).astype(o_ref.dtype)


def self_attention(x, w_qkv_t, w_proj_t, b_proj, *, num_heads):
    """x: (B, N, C); w_qkv_t: (C, 3C); w_proj_t: (C, C); b_proj: (C,)."""
    b, n, c = x.shape
    assert c % num_heads == 0, "dim should be divisible by num_heads"
    dh = c // num_heads
    scale = dh ** -0.5
    in_dtype = x.dtype

    # Host-side prep: fold softmax scale into the Q columns of the fused weight,
    # reshape the output projection per head for the fused head-concat matmul.
    w_fused = jnp.concatenate([w_qkv_t[:, :c] * scale, w_qkv_t[:, c:]],
                              axis=1).astype(in_dtype)           # (C, 3C)
    w_proj_hdc = w_proj_t.reshape(num_heads, dh, c).astype(in_dtype)
    b_proj2d = b_proj.reshape(1, c).astype(jnp.float32)

    n_pad, tq, tk = _choose_tiles(n)
    if n_pad != n:
        x = jnp.pad(x, ((0, 0), (0, n_pad - n), (0, 0)))

    # ------------------- pass 1: fused QKV projection ----------------------
    tn = n_pad if n_pad <= 512 else 256
    qkv = pl.pallas_call(
        _qkv_proj_kernel,
        out_shape=jax.ShapeDtypeStruct((b, n_pad, 3 * c), in_dtype),
        grid_spec=pltpu.PrefetchScalarGridSpec(
            num_scalar_prefetch=0,
            grid=(b, n_pad // tn),
            in_specs=[
                pl.BlockSpec((1, tn, c), lambda bi, ti: (bi, ti, 0)),
                pl.BlockSpec((c, 3 * c), lambda bi, ti: (0, 0)),
            ],
            out_specs=pl.BlockSpec((1, tn, 3 * c), lambda bi, ti: (bi, ti, 0)),
        ),
        compiler_params=pltpu.CompilerParams(
            dimension_semantics=("parallel", "parallel"),
            vmem_limit_bytes=32 * 1024 * 1024,
        ),
    )(x, w_fused)

    # --------------- pass 2: flash attention + output projection -----------
    kernel = functools.partial(_flash_attn_kernel,
                               num_heads=num_heads,
                               n_real=n,
                               mask_keys=(n_pad != n))
    out = pl.pallas_call(
        kernel,
        out_shape=jax.ShapeDtypeStruct((b, n_pad, c), in_dtype),
        grid_spec=pltpu.PrefetchScalarGridSpec(
            num_scalar_prefetch=0,
            grid=(b, n_pad // tq, n_pad // tk),
            in_specs=[
                pl.BlockSpec((1, tq, c), lambda bi, qi, ki: (bi, qi, 0)),  # Q
                pl.BlockSpec((1, tk, c), lambda bi, qi, ki: (bi, ki, 1)),  # K
                pl.BlockSpec((1, tk, c), lambda bi, qi, ki: (bi, ki, 2)),  # V
                pl.BlockSpec((num_heads, dh, c), lambda bi, qi, ki: (0, 0, 0)),
                pl.BlockSpec((1, c), lambda bi, qi, ki: (0, 0)),
            ],
            out_specs=pl.BlockSpec((1, tq, c), lambda bi, qi, ki: (bi, qi, 0)),
            scratch_shapes=[
                pltpu.VMEM((num_heads, tq, dh), in_dtype),      # cached Q heads
                pltpu.VMEM((num_heads, tq, 1), jnp.float32),    # running max
                pltpu.VMEM((num_heads, tq, 1), jnp.float32),    # running denom
                pltpu.VMEM((num_heads, tq, dh), jnp.float32),   # PV accumulator
            ],
        ),
        compiler_params=pltpu.CompilerParams(
            dimension_semantics=("parallel", "parallel", "arbitrary"),
            vmem_limit_bytes=32 * 1024 * 1024,
        ),
    )(qkv, qkv, qkv, w_proj_hdc, b_proj2d)

    if n_pad != n:
        out = out[:, :n, :]
    return out


def self_attention_ref(x, w_qkv_t, w_proj_t, b_proj, *, num_heads):
    """Pure-JAX reference mirroring the PyTorch forward."""
    b, n, c = x.shape
    h = num_heads
    dh = c // h
    scale = dh ** -0.5
    qkv = x @ w_qkv_t                                            # (B, N, 3C)
    qkv = qkv.reshape(b, n, 3, h, dh).transpose(2, 0, 3, 1, 4)   # (3, B, H, N, Dh)
    q, k, v = qkv[0], qkv[1], qkv[2]
    attn = jnp.einsum('bhnd,bhmd->bhnm', q, k) * scale
    attn = jax.nn.softmax(attn, axis=-1)
    out = jnp.einsum('bhnm,bhmd->bhnd', attn, v)                 # (B, H, N, Dh)
    out = out.transpose(0, 2, 1, 3).reshape(b, n, c)
    return out @ w_proj_t + b_proj


if __name__ == "__main__":
    num_heads = 8   # module defaults: dim=256, num_heads=8 -> head_dim=32
    key = jax.random.PRNGKey(0)

    def make_case(key, b, n, c):
        kx, kqkv, kproj, kb = jax.random.split(key, 4)
        x = jax.random.normal(kx, (b, n, c), dtype=jnp.float32)
        w_qkv_t = jax.random.normal(kqkv, (c, 3 * c), dtype=jnp.float32) * (c ** -0.5)
        w_proj_t = jax.random.normal(kproj, (c, c), dtype=jnp.float32) * (c ** -0.5)
        b_proj = jax.random.normal(kb, (c,), dtype=jnp.float32) * 0.01
        return x, w_qkv_t, w_proj_t, b_proj

    # Small case (module-default dim, tiny sequence): single padded tile.
    B, N, C = 2, 8, 256
    x, w_qkv_t, w_proj_t, b_proj = make_case(key, B, N, C)
    out = jax.block_until_ready(
        self_attention(x, w_qkv_t, w_proj_t, b_proj, num_heads=num_heads))
    ref = self_attention_ref(x, w_qkv_t, w_proj_t, b_proj, num_heads=num_heads)
    assert out.shape == (B, N, C)
    assert jnp.allclose(out, ref, atol=2e-3, rtol=2e-3), "mismatch vs reference (small)"

    # Larger case exercising multi-tile flash accumulation + key masking.
    B2, N2 = 1, 640   # pads to 768 -> 3 query tiles x 3 KV tiles
    x2, w2_qkv, w2_proj, b2 = make_case(jax.random.PRNGKey(1), B2, N2, C)
    out2 = jax.block_until_ready(
        self_attention(x2, w2_qkv, w2_proj, b2, num_heads=num_heads))
    ref2 = self_attention_ref(x2, w2_qkv, w2_proj, b2, num_heads=num_heads)
    assert out2.shape == (B2, N2, C)
    assert jnp.allclose(out2, ref2, atol=2e-3, rtol=2e-3), "mismatch vs reference (flash)"

    print("KERNEL_OK")
</pallas_src>

<mosaic_0001>
module attributes {stable_mosaic.version = 11 : i64} {
  func.func @_qkv_proj_kernel(%arg0: i32, %arg1: i32, %arg2: memref<1x128x256xf32, #tpu.memory_space<vmem>>, %arg3: memref<256x768xf32, #tpu.memory_space<vmem>>, %arg4: memref<1x128x768xf32, #tpu.memory_space<vmem>>) attributes {dimension_semantics = [#tpu.dimension_semantics<parallel>, #tpu.dimension_semantics<parallel>], iteration_bounds = array<i64: 2, 1>, scalar_prefetch = 0 : i64, scratch_operands = 0 : i64, tpu.core_type = #tpu.core_type<tc>, window_params = [{transform_indices = @transform_0, window_bounds = array<i64: 1, 128, 256>}, {pipeline_mode = #tpu.pipeline_mode<synchronous>, transform_indices = @transform_1, window_bounds = array<i64: 256, 768>}, {transform_indices = @transform_2, window_bounds = array<i64: 1, 128, 768>}]} {
    %c0 = arith.constant 0 : index
    %c0_0 = arith.constant 0 : index
    %c0_1 = arith.constant 0 : index
    %0 = vector.load %arg2[%c0, %c0_0, %c0_1] : memref<1x128x256xf32, #tpu.memory_space<vmem>>, vector<1x128x256xf32>
    %1 = vector.shape_cast %0 : vector<1x128x256xf32> to vector<128x256xf32>
    %c0_2 = arith.constant 0 : index
    %c0_3 = arith.constant 0 : index
    %2 = vector.load %arg3[%c0_2, %c0_3] : memref<256x768xf32, #tpu.memory_space<vmem>>, vector<256x768xf32>
    %cst = arith.constant dense<0.000000e+00> : vector<128x768xf32>
    %3 = tpu.matmul %1, %2, %cst {dimension_numbers = #tpu.dot_dimension_numbers<[1], [0], [0], [1], [0, 0, 1, 1], [], []>} : vector<128x256xf32>, vector<256x768xf32>, vector<128x768xf32> -> vector<128x768xf32>
    %c0_4 = arith.constant 0 : index
    %c0_5 = arith.constant 0 : index
    %c0_6 = arith.constant 0 : index
    %4 = vector.load %arg4[%c0_4, %c0_5, %c0_6] : memref<1x128x768xf32, #tpu.memory_space<vmem>>, vector<1x128x768xf32>
    %5 = vector.shape_cast %4 : vector<1x128x768xf32> to vector<128x768xf32>
    %6 = vector.shape_cast %3 : vector<128x768xf32> to vector<1x128x768xf32>
    tpu.vector_store %arg4[%c0_4, %c0_5, %c0_6], %6 {strides = array<i32>} : memref<1x128x768xf32, #tpu.memory_space<vmem>>, vector<1x128x768xf32>,
    return
  }
  func.func @transform_0(%arg0: i32, %arg1: i32) -> (i32, i32, i32) {
    %c0_i32 = arith.constant 0 : i32
    %c0_i32_0 = arith.constant 0 : i32
    return %arg0, %arg1, %c0_i32 : i32, i32, i32
  }
  func.func @transform_1(%arg0: i32, %arg1: i32) -> (i32, i32) {
    %c0_i32 = arith.constant 0 : i32
    %c0_i32_0 = arith.constant 0 : i32
    %c0_i32_1 = arith.constant 0 : i32
    return %c0_i32, %c0_i32_0 : i32, i32
  }
  func.func @transform_2(%arg0: i32, %arg1: i32) -> (i32, i32, i32) {
    %c0_i32 = arith.constant 0 : i32
    %c0_i32_0 = arith.constant 0 : i32
    return %arg0, %arg1, %c0_i32 : i32, i32, i32
  }
}

</mosaic_0001>

<llo_original>
// kernel: tpu_custom_call.1
$region0: #{tpu_custom_call.1}
  #allocation0 [shape = 'u32[]', space=smem, size = 0x4, offset = 0x4, fixed_abs, tag = 'smem constant byte address 0x4 - core index']
  #allocation1 [shape = 'u32[144,128]{1,0:T(1,128)}', space=vmem, size = 0x12000, scoped, tag = 'internal scratch']
  %s0 = inlined_call_operand.hbm [shape: f32[2,128,256], index: 0, kind: input, shape index: {}]
  %s1 = inlined_call_operand.hbm [shape: f32[256,768], index: 1, kind: input, shape index: {}]
  %s2 = inlined_call_operand.hbm [shape: f32[2,128,768], index: 2, kind: output, shape index: {}]
  %s3 = sld [smem:[#allocation0]]
  $region49: #{tpu_custom_call.1} parent=0
    _
  %s5 = ssub.s32 1, %s3
  %s6 = scalar_select 0, %s5, %s3
  $region1: #{tpu_custom_call.1} parent=0
    #allocation2 [shape = 'u8[262144]{0}', space=vmem, size = 0x40000, scoped, tag = 'input window, operand 0']
    #allocation3 [shape = 's32[2]{0}', space=sflag, size = 0x8, scoped, tag = 'scoped memory for tpu_custom_call.1']
    #allocation4 [shape = 's32[2]{0}', space=sflag, size = 0x8, scoped, tag = 'scoped memory for tpu_custom_call.1']
    #allocation5 [shape = 'u8[786432]{0}', space=vmem, size = 0xc0000, scoped, tag = 'input window, operand 1, single buffered']
    #allocation6 [shape = 's32[1]{0}', space=sflag, size = 0x4, scoped, tag = 'scoped memory for tpu_custom_call.1']
    #allocation7 [shape = 'u8[786432]{0}', space=vmem, size = 0xc0000, scoped, tag = 'output window, operand 0']
    %7 = vsyncpa [#allocation3], 0
    %s8 = scalar_lea.sflag [#allocation3], 1
    %9 = vsyncpa %s8, 0
    %10 = vsyncpa [#allocation6], 0
    %11 = vsyncpa [#allocation4], 0
    %s12 = scalar_lea.sflag [#allocation4], 1
    %13 = vsyncpa %s12, 0
    loop: start=0, step=1, limit=4
    $region2: #{tpu_custom_call.1} parent=1 // loop_pre_header
      _
    $region3: #{tpu_custom_call.1} parent=1 // loop_header
      %s15 = sphi 0, %s19
      %p16 = scmp.ge.s32.totalorder %s15, 4
      %s22 = sphi 0, %s34
      %s23 = sphi 0, %s30
      %s24 = sphi 0, %s22
      %s25 = sphi 0, %s23
      %s26 = sphi 0, %s24
      %s27 = sphi 0, %s25
      %s39 = sphi 0, %s41
      %s42 = sphi 0, %s39
      %s43 = sphi 0, %s42
      %s59 = sphi 0, %s43
      %s63 = sphi 0, %s63
      %s65 = sphi 0, %s63
      %s66 = sphi 0, %s65
      %s80 = sphi 0, %s66
      %s88 = sphi 0, %s90
      %s91 = sphi 0, %s88
      %s92 = sphi 0, %s91
      %s108 = sphi 0, %s92
    $region4: #{tpu_custom_call.1} parent=1 // loop_header_branch
      %18 = sbr.rel (%p16) target = $region8
    $region5: #{tpu_custom_call.1} parent=1 // loop_body
      %s20 = ssub.s32 %s15, 1
      %s21 = ssub.s32 %s15, 2
      %s28 = sadd.s32 1, %s23
      %p29 = scmp.ge.s32.totalorder %s28, 1
      %s30 = scalar_select %p29, 0, %s28
      %s31 = sadd.s32 1, %s22
      %s32 = scalar_select %p29, %s31, %s22
      %p33 = scmp.ge.s32.totalorder %s32, 2
      %s34 = scalar_select %p33, 0, %s32
      %s35 = ssub.s32 %s22, %s34
      %s36 = ssub.s32 %s23, %s30
      %s37 = sor.u32 %s35, %s36
      %p38 = scmp.eq.s32.totalorder %s37, 0
      %s40 = sadd.s32 %s39, 1
      %s41 = scalar_select %p38, %s39, %s40
      %p44 = pneg %p38
      %p45 = scmp.eq.s32.totalorder %s15, 1
      %p46 = por %p44, %p45
      %p47 = scmp.ne.s32.totalorder %s39, %s42
      %p48 = scmp.eq.s32.totalorder %s15, 0
      %p49 = por %p47, %p48
      %p50 = scmp.ne.s32.totalorder %s39, %s42
      %p51 = scmp.eq.s32.totalorder %s20, 1
      %p52 = por %p50, %p51
      %p53 = scmp.ne.s32.totalorder %s42, %s43
      %p54 = scmp.eq.s32.totalorder %s20, 0
      %p55 = por %p53, %p54
      %p56 = scmp.ne.s32.totalorder %s42, %s43
      %p57 = scmp.eq.s32.totalorder %s21, 1
      %p58 = por %p56, %p57
      %p60 = scmp.ne.s32.totalorder %s43, %s59
      %p61 = scmp.eq.s32.totalorder %s21, 0
      %p62 = por %p60, %p61
      %s64 = sadd.s32 %s63, 1
      %p67 = scmp.eq.s32.totalorder %s15, 1
      %p68 = scmp.ne.s32.totalorder %s63, %s65
      %p69 = scmp.eq.s32.totalorder %s15, 0
      %p70 = por %p68, %p69
      %p71 = scmp.ne.s32.totalorder %s63, %s65
      %p72 = scmp.eq.s32.totalorder %s20, 1
      %p73 = por %p71, %p72
      %p74 = scmp.ne.s32.totalorder %s65, %s66
      %p75 = scmp.eq.s32.totalorder %s20, 0
      %p76 = por %p74, %p75
      %p77 = scmp.ne.s32.totalorder %s65, %s66
      %p78 = scmp.eq.s32.totalorder %s21, 1
      %p79 = por %p77, %p78
      %p81 = scmp.ne.s32.totalorder %s66, %s80
      %p82 = scmp.eq.s32.totalorder %s21, 0
      %p83 = por %p81, %p82
      %s84 = ssub.s32 %s22, %s34
      %s85 = ssub.s32 %s23, %s30
      %s86 = sor.u32 %s84, %s85
      %p87 = scmp.eq.s32.totalorder %s86, 0
      %s89 = sadd.s32 %s88, 1
      %s90 = scalar_select %p87, %s88, %s89
      %p93 = pneg %p87
      %p94 = scmp.eq.s32.totalorder %s15, 1
      %p95 = por %p93, %p94
      %p96 = scmp.ne.s32.totalorder %s88, %s91
      %p97 = scmp.eq.s32.totalorder %s15, 0
      %p98 = por %p96, %p97
      %p99 = scmp.ne.s32.totalorder %s88, %s91
      %p100 = scmp.eq.s32.totalorder %s20, 1
      %p101 = por %p99, %p100
      %p102 = scmp.ne.s32.totalorder %s91, %s92
      %p103 = scmp.eq.s32.totalorder %s20, 0
      %p104 = por %p102, %p103
      %p105 = scmp.ne.s32.totalorder %s91, %s92
      %p106 = scmp.eq.s32.totalorder %s21, 1
      %p107 = por %p105, %p106
      %p109 = scmp.ne.s32.totalorder %s92, %s108
      %p110 = scmp.eq.s32.totalorder %s21, 0
      %p111 = por %p109, %p110
      %p112 = scmp.le.s32.totalorder 1, %s15
      %p113 = scmp.lt.s32.totalorder %s15, 3
      %p114 = pnand %p112, %p113
      %p115 = pneg %p114
      // Predicated region
      $region9: #{tpu_custom_call.1} parent=5 // pred_check
        _
      $region10: #{tpu_custom_call.1} parent=5 // pred_check_branch
        %117 = sbr.rel (%p114) target = $region12
      $region11: #{tpu_custom_call.1} parent=5 // pred_region
        %s118 = ssub.s32 %s15, 1
        // Predicated region
        $region13: #{tpu_custom_call.1} parent=11 // pred_check
          %p119 = pneg %p76
        $region14: #{tpu_custom_call.1} parent=11 // pred_check_branch
          %121 = sbr.rel (%p119) target = $region16
        $region15: #{tpu_custom_call.1} parent=11 // pred_region
          %s123 = ssub.s32 24576, 24576
          %124 = vsyncadd [#allocation6], %s123
          %s125 = sshll.u32 [#allocation5], 4
          %s126 = int_to_ptr.vmem [resolvable:$true] %s125
          %131 = dma.hbm_to_vmem [thread:$0]  %s1, 24576, %s126, [#allocation6], 768, 768, 48
        $region16: #{tpu_custom_call.1} parent=11 // pred_fallthru
          _
      $region12: #{tpu_custom_call.1} parent=5 // pred_fallthru
        _
      %p132 = scmp.lt.s32.totalorder %s15, 2
      // Predicated region
      $region17: #{tpu_custom_call.1} parent=5 // pred_check
        %p133 = pneg %p132
      $region18: #{tpu_custom_call.1} parent=5 // pred_check_branch
        %135 = sbr.rel (%p133) target = $region20
      $region19: #{tpu_custom_call.1} parent=5 // pred_region
        // Predicated region
        $region21: #{tpu_custom_call.1} parent=19 // pred_check
          %p136 = pneg %p49
        $region22: #{tpu_custom_call.1} parent=19 // pred_check_branch
          %138 = sbr.rel (%p136) target = $region24
        $region23: #{tpu_custom_call.1} parent=19 // pred_region
          %s139 = sand.u32 %s39, 1
          %s140 = scalar_lea.sflag [#allocation3], %s139
          %s141 = sand.u32 %s39, 1
          %s142 = smul.addr %s141, 256
          %s143 = scalar_lea.vmem [#allocation2], %s142
          %s144 = smul.u32 16, %s23
          %s146 = ssub.s32 4096, 4096
          %147 = vsyncadd %s140, %s146
          %s148 = smul.addr %s144, 2
          %s149 = smul.addr %s22, 32
          %s150 = sadd.s32 %s148, %s149
          %s151 = smul.addr %s150, 128
          %s152 = scalar_lea.hbm %s0, %s151
          %s153 = sshll.u32 %s143, 4
          %s154 = int_to_ptr.vmem [resolvable:$true] %s153
          %159 = dma.hbm_to_vmem [thread:$0]  %s152, 4096, %s154, %s140, 256, 256, 16
        $region24: #{tpu_custom_call.1} parent=19 // pred_fallthru
          _
      $region20: #{tpu_custom_call.1} parent=5 // pred_fallthru
        _
      %p160 = scmp.le.s32.totalorder 1, %s15
      %p161 = scmp.lt.s32.totalorder %s15, 3
      %p162 = pnand %p160, %p161
      %p163 = pneg %p162
      // Predicated region
      $region25: #{tpu_custom_call.1} parent=5 // pred_check
        _
      $region26: #{tpu_custom_call.1} parent=5 // pred_check_branch
        %165 = sbr.rel (%p162) target = $region28
      $region27: #{tpu_custom_call.1} parent=5 // pred_region
        %s166 = ssub.s32 %s15, 1
        %s167 = sand.u32 %s42, 1
        %s168 = scalar_lea.sflag [#allocation3], %s167
        %s169 = sand.u32 %s42, 1
        %s170 = smul.addr %s169, 256
        %s171 = scalar_lea.vmem [#allocation2], %s170
        // Predicated region
        $region29: #{tpu_custom_call.1} parent=27 // pred_check
          %p172 = pneg %p55
        $region30: #{tpu_custom_call.1} parent=27 // pred_check_branch
          %174 = sbr.rel (%p172) target = $region32
        $region31: #{tpu_custom_call.1} parent=27 // pred_region
          %175 = dma.done %s168, 4096
        $region32: #{tpu_custom_call.1} parent=27 // pred_fallthru
          _
        // Predicated region
        $region33: #{tpu_custom_call.1} parent=27 // pred_check
          %p176 = pneg %p76
        $region34: #{tpu_custom_call.1} parent=27 // pred_check_branch
          %178 = sbr.rel (%p176) target = $region36
        $region35: #{tpu_custom_call.1} parent=27 // pred_region
          %179 = dma.done [#allocation6], 24576
        $region36: #{tpu_custom_call.1} parent=27 // pred_fallthru
          _
        %s180 = sand.u32 %s42, 1
        %s181 = scalar_lea.sflag [#allocation3], %s180
        %s182 = sand.u32 %s42, 1
        %s183 = smul.addr %s182, 256
        %s184 = scalar_lea.vmem [#allocation2], %s183
        %p185 = pneg %p55
        %p186 = pneg %p52
        %p187 = pneg %p76
        %p188 = pneg %p73
        %p189 = pneg %p104
        %p190 = pneg %p101
        %s191 = sand.u32 %s91, 1
        %s192 = scalar_lea.sflag [#allocation4], %s191
        %s193 = sand.u32 %s91, 1
        %s194 = smul.addr %s193, 768
        %s195 = scalar_lea.vmem [#allocation7], %s194
        %s196 = smul.u32 16, %s25
        %s197 = smul.u32 16, %s25
        %v198 = vld [vmem:[%s171] sm:$0xff]
        %v199 = vld [vmem:[%s171 + $0x8] sm:$0xff]
        %v200 = vld [vmem:[%s171 + $0x10] sm:$0xff]
        %v201 = vld [vmem:[%s171 + $0x18] sm:$0xff]
        %v202 = vld [vmem:[%s171 + $0x20] sm:$0xff]
        %v203 = vld [vmem:[%s171 + $0x28] sm:$0xff]
        %v204 = vld [vmem:[%s171 + $0x30] sm:$0xff]
        %v205 = vld [vmem:[%s171 + $0x38] sm:$0xff]
        %v206 = vld [vmem:[%s171 + $0x40] sm:$0xff]
        %v207 = vld [vmem:[%s171 + $0x48] sm:$0xff]
        %v208 = vld [vmem:[%s171 + $0x50] sm:$0xff]
        %v209 = vld [vmem:[%s171 + $0x58] sm:$0xff]
        %v210 = vld [vmem:[%s171 + $0x60] sm:$0xff]
        %v211 = vld [vmem:[%s171 + $0x68] sm:$0xff]
        %v212 = vld [vmem:[%s171 + $0x70] sm:$0xff]
        %v213 = vld [vmem:[%s171 + $0x78] sm:$0xff]
        %v214 = vld [vmem:[%s171 + $0x80] sm:$0xff]
        %v215 = vld [vmem:[%s171 + $0x88] sm:$0xff]
        %v216 = vld [vmem:[%s171 + $0x90] sm:$0xff]
        %v217 = vld [vmem:[%s171 + $0x98] sm:$0xff]
        %v218 = vld [vmem:[%s171 + $0xa0] sm:$0xff]
        %v219 = vld [vmem:[%s171 + $0xa8] sm:$0xff]
        %v220 = vld [vmem:[%s171 + $0xb0] sm:$0xff]
        %v221 = vld [vmem:[%s171 + $0xb8] sm:$0xff]
        %v222 = vld [vmem:[%s171 + $0xc0] sm:$0xff]
        %v223 = vld [vmem:[%s171 + $0xc8] sm:$0xff]
        %v224 = vld [vmem:[%s171 + $0xd0] sm:$0xff]
        %v225 = vld [vmem:[%s171 + $0xd8] sm:$0xff]
        %v226 = vld [vmem:[%s171 + $0xe0] sm:$0xff]
        %v227 = vld [vmem:[%s171 + $0xe8] sm:$0xff]
        %v228 = vld [vmem:[%s171 + $0xf0] sm:$0xff]
        %v229 = vld [vmem:[%s171 + $0xf8] sm:$0xff]
        %v230 = vld [vmem:[#allocation5] sm:$0xff]
        %v231 = vld [vmem:[#allocation5 + $0x8] sm:$0xff]
        %v232 = vld [vmem:[#allocation5 + $0x10] sm:$0xff]
        %v233 = vld [vmem:[#allocation5 + $0x18] sm:$0xff]
        %v234 = vld [vmem:[#allocation5 + $0x20] sm:$0xff]
        %v235 = vld [vmem:[#allocation5 + $0x28] sm:$0xff]
        %v236 = vld [vmem:[#allocation5 + $0x30] sm:$0xff]
        %v237 = vld [vmem:[#allocation5 + $0x38] sm:$0xff]
        %v238 = vld [vmem:[#allocation5 + $0x40] sm:$0xff]
        %v239 = vld [vmem:[#allocation5 + $0x48] sm:$0xff]
        %v240 = vld [vmem:[#allocation5 + $0x50] sm:$0xff]
        %v241 = vld [vmem:[#allocation5 + $0x58] sm:$0xff]
        %v242 = vld [vmem:[#allocation5 + $0x60] sm:$0xff]
        %v243 = vld [vmem:[#allocation5 + $0x68] sm:$0xff]
        %v244 = vld [vmem:[#allocation5 + $0x70] sm:$0xff]
        %v245 = vld [vmem:[#allocation5 + $0x78] sm:$0xff]
        %v246 = vld [vmem:[#allocation5 + $0x80] sm:$0xff]
        %v247 = vld [vmem:[#allocation5 + $0x88] sm:$0xff]
        %v248 = vld [vmem:[#allocation5 + $0x90] sm:$0xff]
        %v249 = vld [vmem:[#allocation5 + $0x98] sm:$0xff]
        %v250 = vld [vmem:[#allocation5 + $0xa0] sm:$0xff]
        %v251 = vld [vmem:[#allocation5 + $0xa8] sm:$0xff]
        %v252 = vld [vmem:[#allocation5 + $0xb0] sm:$0xff]
        %v253 = vld [vmem:[#allocation5 + $0xb8] sm:$0xff]
        %v254 = vld [vmem:[#allocation5 + $0xc0] sm:$0xff]
        %v255 = vld [vmem:[#allocation5 + $0xc8] sm:$0xff]
        %v256 = vld [vmem:[#allocation5 + $0xd0] sm:$0xff]
        %v257 = vld [vmem:[#allocation5 + $0xd8] sm:$0xff]
        %v258 = vld [vmem:[#allocation5 + $0xe0] sm:$0xff]
        %v259 = vld [vmem:[#allocation5 + $0xe8] sm:$0xff]
        %v260 = vld [vmem:[#allocation5 + $0xf0] sm:$0xff]
        %v261 = vld [vmem:[#allocation5 + $0xf8] sm:$0xff]
        %v262 = vld [vmem:[#allocation5 + $0x100] sm:$0xff]
        %v263 = vld [vmem:[#allocation5 + $0x108] sm:$0xff]
        %v264 = vld [vmem:[#allocation5 + $0x110] sm:$0xff]
        %v265 = vld [vmem:[#allocation5 + $0x118] sm:$0xff]
        %v266 = vld [vmem:[#allocation5 + $0x120] sm:$0xff]
        %v267 = vld [vmem:[#allocation5 + $0x128] sm:$0xff]
        %v268 = vld [vmem:[#allocation5 + $0x130] sm:$0xff]
        %v269 = vld [vmem:[#allocation5 + $0x138] sm:$0xff]
        %v270 = vld [vmem:[#allocation5 + $0x140] sm:$0xff]
        %v271 = vld [vmem:[#allocation5 + $0x148] sm:$0xff]
        %v272 = vld [vmem:[#allocation5 + $0x150] sm:$0xff]
        %v273 = vld [vmem:[#allocation5 + $0x158] sm:$0xff]
        %v274 = vld [vmem:[#allocation5 + $0x160] sm:$0xff]
        %v275 = vld [vmem:[#allocation5 + $0x168] sm:$0xff]
        %v276 = vld [vmem:[#allocation5 + $0x170] sm:$0xff]
        %v277 = vld [vmem:[#allocation5 + $0x178] sm:$0xff]
        %v278 = vld [vmem:[#allocation5 + $0x180] sm:$0xff]
        %v279 = vld [vmem:[#allocation5 + $0x188] sm:$0xff]
        %v280 = vld [vmem:[#allocation5 + $0x190] sm:$0xff]
        %v281 = vld [vmem:[#allocation5 + $0x198] sm:$0xff]
        %v282 = vld [vmem:[#allocation5 + $0x1a0] sm:$0xff]
        %v283 = vld [vmem:[#allocation5 + $0x1a8] sm:$0xff]
        %v284 = vld [vmem:[#allocation5 + $0x1b0] sm:$0xff]
        %v285 = vld [vmem:[#allocation5 + $0x1b8] sm:$0xff]
        %v286 = vld [vmem:[#allocation5 + $0x1c0] sm:$0xff]
        %v287 = vld [vmem:[#allocation5 + $0x1c8] sm:$0xff]
        %v288 = vld [vmem:[#allocation5 + $0x1d0] sm:$0xff]
        %v289 = vld [vmem:[#allocation5 + $0x1d8] sm:$0xff]
        %v290 = vld [vmem:[#allocation5 + $0x1e0] sm:$0xff]
        %v291 = vld [vmem:[#allocation5 + $0x1e8] sm:$0xff]
        %v292 = vld [vmem:[#allocation5 + $0x1f0] sm:$0xff]
        %v293 = vld [vmem:[#allocation5 + $0x1f8] sm:$0xff]
        %v294 = vld [vmem:[#allocation5 + $0x200] sm:$0xff]
        %v295 = vld [vmem:[#allocation5 + $0x208] sm:$0xff]
        %v296 = vld [vmem:[#allocation5 + $0x210] sm:$0xff]
        %v297 = vld [vmem:[#allocation5 + $0x218] sm:$0xff]
        %v298 = vld [vmem:[#allocation5 + $0x220] sm:$0xff]
        %v299 = vld [vmem:[#allocation5 + $0x228] sm:$0xff]
        %v300 = vld [vmem:[#allocation5 + $0x230] sm:$0xff]
        %v301 = vld [vmem:[#allocation5 + $0x238] sm:$0xff]
        %v302 = vld [vmem:[#allocation5 + $0x240] sm:$0xff]
        %v303 = vld [vmem:[#allocation5 + $0x248] sm:$0xff]
        %v304 = vld [vmem:[#allocation5 + $0x250] sm:$0xff]
        %v305 = vld [vmem:[#allocation5 + $0x258] sm:$0xff]
        %v306 = vld [vmem:[#allocation5 + $0x260] sm:$0xff]
        %v307 = vld [vmem:[#allocation5 + $0x268] sm:$0xff]
        %v308 = vld [vmem:[#allocation5 + $0x270] sm:$0xff]
        %v309 = vld [vmem:[#allocation5 + $0x278] sm:$0xff]
        %v310 = vld [vmem:[#allocation5 + $0x280] sm:$0xff]
        %v311 = vld [vmem:[#allocation5 + $0x288] sm:$0xff]
        %v312 = vld [vmem:[#allocation5 + $0x290] sm:$0xff]
        %v313 = vld [vmem:[#allocation5 + $0x298] sm:$0xff]
        %v314 = vld [vmem:[#allocation5 + $0x2a0] sm:$0xff]
        %v315 = vld [vmem:[#allocation5 + $0x2a8] sm:$0xff]
        %v316 = vld [vmem:[#allocation5 + $0x2b0] sm:$0xff]
        %v317 = vld [vmem:[#allocation5 + $0x2b8] sm:$0xff]
        %v318 = vld [vmem:[#allocation5 + $0x2c0] sm:$0xff]
        %v319 = vld [vmem:[#allocation5 + $0x2c8] sm:$0xff]
        %v320 = vld [vmem:[#allocation5 + $0x2d0] sm:$0xff]
        %v321 = vld [vmem:[#allocation5 + $0x2d8] sm:$0xff]
        %v322 = vld [vmem:[#allocation5 + $0x2e0] sm:$0xff]
        %v323 = vld [vmem:[#allocation5 + $0x2e8] sm:$0xff]
        %v324 = vld [vmem:[#allocation5 + $0x2f0] sm:$0xff]
        %v325 = vld [vmem:[#allocation5 + $0x2f8] sm:$0xff]
        %v326 = vld [vmem:[#allocation5 + $0x300] sm:$0xff]
        %v327 = vld [vmem:[#allocation5 + $0x308] sm:$0xff]
        %v328 = vld [vmem:[#allocation5 + $0x310] sm:$0xff]
        %v329 = vld [vmem:[#allocation5 + $0x318] sm:$0xff]
        %v330 = vld [vmem:[#allocation5 + $0x320] sm:$0xff]
        %v331 = vld [vmem:[#allocation5 + $0x328] sm:$0xff]
        %v332 = vld [vmem:[#allocation5 + $0x330] sm:$0xff]
        %v333 = vld [vmem:[#allocation5 + $0x338] sm:$0xff]
        %v334 = vld [vmem:[#allocation5 + $0x340] sm:$0xff]
        %v335 = vld [vmem:[#allocation5 + $0x348] sm:$0xff]
        %v336 = vld [vmem:[#allocation5 + $0x350] sm:$0xff]
        %v337 = vld [vmem:[#allocation5 + $0x358] sm:$0xff]
        %v338 = vld [vmem:[#allocation5 + $0x360] sm:$0xff]
        %v339 = vld [vmem:[#allocation5 + $0x368] sm:$0xff]
        %v340 = vld [vmem:[#allocation5 + $0x370] sm:$0xff]
        %v341 = vld [vmem:[#allocation5 + $0x378] sm:$0xff]
        %v342 = vld [vmem:[#allocation5 + $0x380] sm:$0xff]
        %v343 = vld [vmem:[#allocation5 + $0x388] sm:$0xff]
        %v344 = vld [vmem:[#allocation5 + $0x390] sm:$0xff]
        %v345 = vld [vmem:[#allocation5 + $0x398] sm:$0xff]
        %v346 = vld [vmem:[#allocation5 + $0x3a0] sm:$0xff]
        %v347 = vld [vmem:[#allocation5 + $0x3a8] sm:$0xff]
        %v348 = vld [vmem:[#allocation5 + $0x3b0] sm:$0xff]
        %v349 = vld [vmem:[#allocation5 + $0x3b8] sm:$0xff]
        %v350 = vld [vmem:[#allocation5 + $0x3c0] sm:$0xff]
        %v351 = vld [vmem:[#allocation5 + $0x3c8] sm:$0xff]
        %v352 = vld [vmem:[#allocation5 + $0x3d0] sm:$0xff]
        %v353 = vld [vmem:[#allocation5 + $0x3d8] sm:$0xff]
        %v354 = vld [vmem:[#allocation5 + $0x3e0] sm:$0xff]
        %v355 = vld [vmem:[#allocation5 + $0x3e8] sm:$0xff]
        %v356 = vld [vmem:[#allocation5 + $0x3f0] sm:$0xff]
        %v357 = vld [vmem:[#allocation5 + $0x3f8] sm:$0xff]
        %v358 = vld [vmem:[#allocation5 + $0x400] sm:$0xff]
        %v359 = vld [vmem:[#allocation5 + $0x408] sm:$0xff]
        %v360 = vld [vmem:[#allocation5 + $0x410] sm:$0xff]
        %v361 = vld [vmem:[#allocation5 + $0x418] sm:$0xff]
        %v362 = vld [vmem:[#allocation5 + $0x420] sm:$0xff]
        %v363 = vld [vmem:[#allocation5 + $0x428] sm:$0xff]
        %v364 = vld [vmem:[#allocation5 + $0x430] sm:$0xff]
        %v365 = vld [vmem:[#allocation5 + $0x438] sm:$0xff]
        %v366 = vld [vmem:[#allocation5 + $0x440] sm:$0xff]
        %v367 = vld [vmem:[#allocation5 + $0x448] sm:$0xff]
        %v368 = vld [vmem:[#allocation5 + $0x450] sm:$0xff]
        %v369 = vld [vmem:[#allocation5 + $0x458] sm:$0xff]
        %v370 = vld [vmem:[#allocation5 + $0x460] sm:$0xff]
        %v371 = vld [vmem:[#allocation5 + $0x468] sm:$0xff]
        %v372 = vld [vmem:[#allocation5 + $0x470] sm:$0xff]
        %v373 = vld [vmem:[#allocation5 + $0x478] sm:$0xff]
        %v374 = vld [vmem:[#allocation5 + $0x480] sm:$0xff]
        %v375 = vld [vmem:[#allocation5 + $0x488] sm:$0xff]
        %v376 = vld [vmem:[#allocation5 + $0x490] sm:$0xff]
        %v377 = vld [vmem:[#allocation5 + $0x498] sm:$0xff]
        %v378 = vld [vmem:[#allocation5 + $0x4a0] sm:$0xff]
        %v379 = vld [vmem:[#allocation5 + $0x4a8] sm:$0xff]
        %v380 = vld [vmem:[#allocation5 + $0x4b0] sm:$0xff]
        %v381 = vld [vmem:[#allocation5 + $0x4b8] sm:$0xff]
        %v382 = vld [vmem:[#allocation5 + $0x4c0] sm:$0xff]
        %v383 = vld [vmem:[#allocation5 + $0x4c8] sm:$0xff]
        %v384 = vld [vmem:[#allocation5 + $0x4d0] sm:$0xff]
        %v385 = vld [vmem:[#allocation5 + $0x4d8] sm:$0xff]
        %v386 = vld [vmem:[#allocation5 + $0x4e0] sm:$0xff]
        %v387 = vld [vmem:[#allocation5 + $0x4e8] sm:$0xff]
        %v388 = vld [vmem:[#allocation5 + $0x4f0] sm:$0xff]
        %v389 = vld [vmem:[#allocation5 + $0x4f8] sm:$0xff]
        %v390 = vld [vmem:[#allocation5 + $0x500] sm:$0xff]
        %v391 = vld [vmem:[#allocation5 + $0x508] sm:$0xff]
        %v392 = vld [vmem:[#allocation5 + $0x510] sm:$0xff]
        %v393 = vld [vmem:[#allocation5 + $0x518] sm:$0xff]
        %v394 = vld [vmem:[#allocation5 + $0x520] sm:$0xff]
        %v395 = vld [vmem:[#allocation5 + $0x528] sm:$0xff]
        %v396 = vld [vmem:[#allocation5 + $0x530] sm:$0xff]
        %v397 = vld [vmem:[#allocation5 + $0x538] sm:$0xff]
        %v398 = vld [vmem:[#allocation5 + $0x540] sm:$0xff]
        %v399 = vld [vmem:[#allocation5 + $0x548] sm:$0xff]
        %v400 = vld [vmem:[#allocation5 + $0x550] sm:$0xff]
        %v401 = vld [vmem:[#allocation5 + $0x558] sm:$0xff]
        %v402 = vld [vmem:[#allocation5 + $0x560] sm:$0xff]
        %v403 = vld [vmem:[#allocation5 + $0x568] sm:$0xff]
        %v404 = vld [vmem:[#allocation5 + $0x570] sm:$0xff]
        %v405 = vld [vmem:[#allocation5 + $0x578] sm:$0xff]
        %v406 = vld [vmem:[#allocation5 + $0x580] sm:$0xff]
        %v407 = vld [vmem:[#allocation5 + $0x588] sm:$0xff]
        %v408 = vld [vmem:[#allocation5 + $0x590] sm:$0xff]
        %v409 = vld [vmem:[#allocation5 + $0x598] sm:$0xff]
        %v410 = vld [vmem:[#allocation5 + $0x5a0] sm:$0xff]
        %v411 = vld [vmem:[#allocation5 + $0x5a8] sm:$0xff]
        %v412 = vld [vmem:[#allocation5 + $0x5b0] sm:$0xff]
        %v413 = vld [vmem:[#allocation5 + $0x5b8] sm:$0xff]
        %v414 = vld [vmem:[#allocation5 + $0x5c0] sm:$0xff]
        %v415 = vld [vmem:[#allocation5 + $0x5c8] sm:$0xff]
        %v416 = vld [vmem:[#allocation5 + $0x5d0] sm:$0xff]
        %v417 = vld [vmem:[#allocation5 + $0x5d8] sm:$0xff]
        %v418 = vld [vmem:[#allocation5 + $0x5e0] sm:$0xff]
        %v419 = vld [vmem:[#allocation5 + $0x5e8] sm:$0xff]
        %v420 = vld [vmem:[#allocation5 + $0x5f0] sm:$0xff]
        %v421 = vld [vmem:[#allocation5 + $0x5f8] sm:$0xff]
        %422 = vmatprep.subr.mxu0 %v231
        %423 = vmatpush1.msra.mxu0 %v230
        %424 = vmatprep.subr.mxu0 %v237
        %425 = vmatpush1.msra.mxu0 %v236
        %426 = vmatprep.subr.mxu0 %v243
        %427 = vmatpush1.msra.mxu0 %v242
        %428 = vmatprep.subr.mxu0 %v249
        %429 = vmatpush1.msra.mxu0 %v248
        %430 = vmatprep.subr.mxu0 %v255
        %431 = vmatpush1.msra.mxu0 %v254
        %432 = vmatprep.subr.mxu0 %v261
        %433 = vmatpush1.msra.mxu0 %v260
        %434 = vmatprep.subr.mxu0 %v267
        %435 = vmatpush1.msra.mxu0 %v266
        %436 = vmatprep.subr.mxu0 %v273
        %437 = vmatpush1.msra.mxu0 %v272
        %438 = vmatprep.subr.mxu0 %v279
        %439 = vmatpush1.msra.mxu0 %v278
        %440 = vmatprep.subr.mxu0 %v285
        %441 = vmatpush1.msra.mxu0 %v284
        %442 = vmatprep.subr.mxu0 %v291
        %443 = vmatpush1.msra.mxu0 %v290
        %444 = vmatprep.subr.mxu0 %v297
        %445 = vmatpush1.msra.mxu0 %v296
        %446 = vmatprep.subr.mxu0 %v303
        %447 = vmatpush1.msra.mxu0 %v302
        %448 = vmatprep.subr.mxu0 %v309
        %449 = vmatpush1.msra.mxu0 %v308
        %450 = vmatprep.subr.mxu0 %v315
        %451 = vmatpush1.msra.mxu0 %v314
        %452 = vmatprep.subr.mxu0 %v321
        %453 = vmatpush1.msra.mxu0 %v320
        %454 = vmatprep.subr.mxu0 %v327
        %455 = vmatpush1.msra.mxu0 %v326
        %456 = vmatprep.subr.mxu0 %v333
        %457 = vmatpush1.msra.mxu0 %v332
        %458 = vmatprep.subr.mxu0 %v339
        %459 = vmatpush1.msra.mxu0 %v338
        %460 = vmatprep.subr.mxu0 %v345
        %461 = vmatpush1.msra.mxu0 %v344
        %462 = vmatprep.subr.mxu0 %v351
        %463 = vmatpush1.msra.mxu0 %v350
        %464 = vmatprep.subr.mxu0 %v357
        %465 = vmatpush1.msra.mxu0 %v356
        %466 = vmatprep.subr.mxu0 %v363
        %467 = vmatpush1.msra.mxu0 %v362
        %468 = vmatprep.subr.mxu0 %v369
        %469 = vmatpush1.msra.mxu0 %v368
        %470 = vmatprep.subr.mxu0 %v375
        %471 = vmatpush1.msra.mxu0 %v374
        %472 = vmatprep.subr.mxu0 %v381
        %473 = vmatpush1.msra.mxu0 %v380
        %474 = vmatprep.subr.mxu0 %v387
        %475 = vmatpush1.msra.mxu0 %v386
        %476 = vmatprep.subr.mxu0 %v393
        %477 = vmatpush1.msra.mxu0 %v392
        %478 = vmatprep.subr.mxu0 %v399
        %479 = vmatpush1.msra.mxu0 %v398
        %480 = vmatprep.subr.mxu0 %v405
        %481 = vmatpush1.msra.mxu0 %v404
        %482 = vmatprep.subr.mxu0 %v411
        %483 = vmatpush1.msra.mxu0 %v410
        %484 = vmatprep.subr.mxu0 %v417
        %485 = vmatpush1.msra.mxu0 %v416
        %486 = vmatprep.mubr.f32.mxu0 %v199
        %487 = vmatmul.mubr.f32.gmra.mrb[0].mxu0 %v198
        %v488 = vpop.f32.mrb[0].mxu0
        %v489 = vadd.f32 0.0, %v488
        %v490 = vpop.f32.mrb[0].mxu0
        %v491 = vadd.f32 0.0, %v490
        %492 = vmatprep.mubr.f32.mxu0 %v201
        %493 = vmatmul.mubr.f32.gmra.mrb[0].mxu0 %v200
        %v494 = vpop.f32.mrb[0].mxu0
        %v495 = vadd.f32 0.0, %v494
        %v496 = vpop.f32.mrb[0].mxu0
        %v497 = vadd.f32 0.0, %v496
        %498 = vmatprep.mubr.f32.mxu0 %v203
        %499 = vmatmul.mubr.f32.gmra.mrb[0].mxu0 %v202
        %v500 = vpop.f32.mrb[0].mxu0
        %v501 = vadd.f32 0.0, %v500
        %v502 = vpop.f32.mrb[0].mxu0
        %v503 = vadd.f32 0.0, %v502
        %504 = vmatprep.mubr.f32.mxu0 %v205
        %505 = vmatmul.mubr.f32.gmra.mrb[0].mxu0 %v204
        %v506 = vpop.f32.mrb[0].mxu0
        %v507 = vadd.f32 0.0, %v506
        %v508 = vpop.f32.mrb[0].mxu0
        %v509 = vadd.f32 0.0, %v508
        %510 = vmatprep.mubr.f32.mxu0 %v207
        %511 = vmatmul.mubr.f32.gmra.mrb[0].mxu0 %v206
        %v512 = vpop.f32.mrb[0].mxu0
        %v513 = vadd.f32 0.0, %v512
        %v514 = vpop.f32.mrb[0].mxu0
        %v515 = vadd.f32 0.0, %v514
        %516 = vmatprep.mubr.f32.mxu0 %v209
        %517 = vmatmul.mubr.f32.gmra.mrb[0].mxu0 %v208
        %v518 = vpop.f32.mrb[0].mxu0
        %v519 = vadd.f32 0.0, %v518
        %v520 = vpop.f32.mrb[0].mxu0
        %v521 = vadd.f32 0.0, %v520
        %522 = vmatprep.mubr.f32.mxu0 %v211
        %523 = vmatmul.mubr.f32.gmra.mrb[0].mxu0 %v210
        %v524 = vpop.f32.mrb[0].mxu0
        %v525 = vadd.f32 0.0, %v524
        %v526 = vpop.f32.mrb[0].mxu0
        %v527 = vadd.f32 0.0, %v526
        %528 = vmatprep.mubr.f32.mxu0 %v213
        %529 = vmatmul.mubr.f32.gmra.mrb[0].mxu0 %v212
        %v530 = vpop.f32.mrb[0].mxu0
        %v531 = vadd.f32 0.0, %v530
        %v532 = vpop.f32.mrb[0].mxu0
        %v533 = vadd.f32 0.0, %v532
        %534 = vmatprep.mubr.f32.mxu0 %v215
        %535 = vmatmul.mubr.f32.gmra.mrb[0].mxu0 %v214
        %v536 = vpop.f32.mrb[0].mxu0
        %v537 = vadd.f32 0.0, %v536
        %v538 = vpop.f32.mrb[0].mxu0
        %v539 = vadd.f32 0.0, %v538
        %540 = vmatprep.mubr.f32.mxu0 %v217
        %541 = vmatmul.mubr.f32.gmra.mrb[0].mxu0 %v216
        %v542 = vpop.f32.mrb[0].mxu0
        %v543 = vadd.f32 0.0, %v542
        %v544 = vpop.f32.mrb[0].mxu0
        %v545 = vadd.f32 0.0, %v544
        %546 = vmatprep.mubr.f32.mxu0 %v219
        %547 = vmatmul.mubr.f32.gmra.mrb[0].mxu0 %v218
        %v548 = vpop.f32.mrb[0].mxu0
        %v549 = vadd.f32 0.0, %v548
        %v550 = vpop.f32.mrb[0].mxu0
        %v551 = vadd.f32 0.0, %v550
        %552 = vmatprep.mubr.f32.mxu0 %v221
        %553 = vmatmul.mubr.f32.gmra.mrb[0].mxu0 %v220
        %v554 = vpop.f32.mrb[0].mxu0
        %v555 = vadd.f32 0.0, %v554
        %v556 = vpop.f32.mrb[0].mxu0
        %v557 = vadd.f32 0.0, %v556
        %558 = vmatprep.mubr.f32.mxu0 %v223
        %559 = vmatmul.mubr.f32.gmra.mrb[0].mxu0 %v222
        %v560 = vpop.f32.mrb[0].mxu0
        %v561 = vadd.f32 0.0, %v560
        %v562 = vpop.f32.mrb[0].mxu0
        %v563 = vadd.f32 0.0, %v562
        %564 = vmatprep.mubr.f32.mxu0 %v225
        %565 = vmatmul.mubr.f32.gmra.mrb[0].mxu0 %v224
        %v566 = vpop.f32.mrb[0].mxu0
        %v567 = vadd.f32 0.0, %v566
        %v568 = vpop.f32.mrb[0].mxu0
        %v569 = vadd.f32 0.0, %v568
        %570 = vmatprep.mubr.f32.mxu0 %v227
        %571 = vmatmul.mubr.f32.gmra.mrb[0].mxu0 %v226
        %v572 = vpop.f32.mrb[0].mxu0
        %v573 = vadd.f32 0.0, %v572
        %v574 = vpop.f32.mrb[0].mxu0
        %v575 = vadd.f32 0.0, %v574
        %576 = vmatprep.mubr.f32.mxu0 %v229
        %577 = vmatmul.mubr.f32.gmra.mrb[0].mxu0 %v228
        %v578 = vpop.f32.mrb[0].mxu0
        %v579 = vadd.f32 0.0, %v578
        %v580 = vpop.f32.mrb[0].mxu0
        %v581 = vadd.f32 0.0, %v580
        %582 = vdwg.mxu0
        %583 = vmatprep.subr.mxu0 %v233
        %584 = vmatpush1.msra.mxu0 %v232
        %585 = vmatprep.subr.mxu0 %v239
        %586 = vmatpush1.msra.mxu0 %v238
        %587 = vmatprep.subr.mxu0 %v245
        %588 = vmatpush1.msra.mxu0 %v244
        %589 = vmatprep.subr.mxu0 %v251
        %590 = vmatpush1.msra.mxu0 %v250
        %591 = vmatprep.subr.mxu0 %v257
        %592 = vmatpush1.msra.mxu0 %v256
        %593 = vmatprep.subr.mxu0 %v263
        %594 = vmatpush1.msra.mxu0 %v262
        %595 = vmatprep.subr.mxu0 %v269
        %596 = vmatpush1.msra.mxu0 %v268
        %597 = vmatprep.subr.mxu0 %v275
        %598 = vmatpush1.msra.mxu0 %v274
        %599 = vmatprep.subr.mxu0 %v281
        %600 = vmatpush1.msra.mxu0 %v280
        %601 = vmatprep.subr.mxu0 %v287
        %602 = vmatpush1.msra.mxu0 %v286
        %603 = vmatprep.subr.mxu0 %v293
        %604 = vmatpush1.msra.mxu0 %v292
        %605 = vmatprep.subr.mxu0 %v299
        %606 = vmatpush1.msra.mxu0 %v298
        %607 = vmatprep.subr.mxu0 %v305
        %608 = vmatpush1.msra.mxu0 %v304
        %609 = vmatprep.subr.mxu0 %v311
        %610 = vmatpush1.msra.mxu0 %v310
        %611 = vmatprep.subr.mxu0 %v317
        %612 = vmatpush1.msra.mxu0 %v316
        %613 = vmatprep.subr.mxu0 %v323
        %614 = vmatpush1.msra.mxu0 %v322
        %615 = vmatprep.subr.mxu0 %v329
        %616 = vmatpush1.msra.mxu0 %v328
        %617 = vmatprep.subr.mxu0 %v335
        %618 = vmatpush1.msra.mxu0 %v334
        %619 = vmatprep.subr.mxu0 %v341
        %620 = vmatpush1.msra.mxu0 %v340
        %621 = vmatprep.subr.mxu0 %v347
        %622 = vmatpush1.msra.mxu0 %v346
        %623 = vmatprep.subr.mxu0 %v353
        %624 = vmatpush1.msra.mxu0 %v352
        %625 = vmatprep.subr.mxu0 %v359
        %626 = vmatpush1.msra.mxu0 %v358
        %627 = vmatprep.subr.mxu0 %v365
        %628 = vmatpush1.msra.mxu0 %v364
        %629 = vmatprep.subr.mxu0 %v371
        %630 = vmatpush1.msra.mxu0 %v370
        %631 = vmatprep.subr.mxu0 %v377
        %632 = vmatpush1.msra.mxu0 %v376
        %633 = vmatprep.subr.mxu0 %v383
        %634 = vmatpush1.msra.mxu0 %v382
        %635 = vmatprep.subr.mxu0 %v389
        %636 = vmatpush1.msra.mxu0 %v388
        %637 = vmatprep.subr.mxu0 %v395
        %638 = vmatpush1.msra.mxu0 %v394
        %639 = vmatprep.subr.mxu0 %v401
        %640 = vmatpush1.msra.mxu0 %v400
        %641 = vmatprep.subr.mxu0 %v407
        %642 = vmatpush1.msra.mxu0 %v406
        %643 = vmatprep.subr.mxu0 %v413
        %644 = vmatpush1.msra.mxu0 %v412
        %645 = vmatprep.subr.mxu0 %v419
        %646 = vmatpush1.msra.mxu0 %v418
        %647 = vmatprep.mubr.f32.mxu0 %v199
        %648 = vmatmul.mubr.f32.gmra.mrb[0].mxu0 %v198
        %v649 = vpop.f32.mrb[0].mxu0
        %v650 = vadd.f32 0.0, %v649
        %v651 = vpop.f32.mrb[0].mxu0
        %v652 = vadd.f32 0.0, %v651
        %653 = vmatprep.mubr.f32.mxu0 %v201
        %654 = vmatmul.mubr.f32.gmra.mrb[0].mxu0 %v200
        %v655 = vpop.f32.mrb[0].mxu0
        %v656 = vadd.f32 0.0, %v655
        %v657 = vpop.f32.mrb[0].mxu0
        %v658 = vadd.f32 0.0, %v657
        %659 = vmatprep.mubr.f32.mxu0 %v203
        %660 = vmatmul.mubr.f32.gmra.mrb[0].mxu0 %v202
        %v661 = vpop.f32.mrb[0].mxu0
        %v662 = vadd.f32 0.0, %v661
        %v663 = vpop.f32.mrb[0].mxu0
        %v664 = vadd.f32 0.0, %v663
        %665 = vmatprep.mubr.f32.mxu0 %v205
        %666 = vmatmul.mubr.f32.gmra.mrb[0].mxu0 %v204
        %v667 = vpop.f32.mrb[0].mxu0
        %v668 = vadd.f32 0.0, %v667
        %v669 = vpop.f32.mrb[0].mxu0
        %v670 = vadd.f32 0.0, %v669
        %671 = vmatprep.mubr.f32.mxu0 %v207
        %672 = vmatmul.mubr.f32.gmra.mrb[0].mxu0 %v206
        %v673 = vpop.f32.mrb[0].mxu0
        %v674 = vadd.f32 0.0, %v673
        %v675 = vpop.f32.mrb[0].mxu0
        %v676 = vadd.f32 0.0, %v675
        %677 = vmatprep.mubr.f32.mxu0 %v209
        %678 = vmatmul.mubr.f32.gmra.mrb[0].mxu0 %v208
        %v679 = vpop.f32.mrb[0].mxu0
        %v680 = vadd.f32 0.0, %v679
        %v681 = vpop.f32.mrb[0].mxu0
        %v682 = vadd.f32 0.0, %v681
        %683 = vmatprep.mubr.f32.mxu0 %v211
        %684 = vmatmul.mubr.f32.gmra.mrb[0].mxu0 %v210
        %v685 = vpop.f32.mrb[0].mxu0
        %v686 = vadd.f32 0.0, %v685
        %v687 = vpop.f32.mrb[0].mxu0
        %v688 = vadd.f32 0.0, %v687
        %689 = vmatprep.mubr.f32.mxu0 %v213
        %690 = vmatmul.mubr.f32.gmra.mrb[0].mxu0 %v212
        %v691 = vpop.f32.mrb[0].mxu0
        %v692 = vadd.f32 0.0, %v691
        %v693 = vpop.f32.mrb[0].mxu0
        %v694 = vadd.f32 0.0, %v693
        %695 = vmatprep.mubr.f32.mxu0 %v215
        %696 = vmatmul.mubr.f32.gmra.mrb[0].mxu0 %v214
        %v697 = vpop.f32.mrb[0].mxu0
        %v698 = vadd.f32 0.0, %v697
        %v699 = vpop.f32.mrb[0].mxu0
        %v700 = vadd.f32 0.0, %v699
        %701 = vmatprep.mubr.f32.mxu0 %v217
        %702 = vmatmul.mubr.f32.gmra.mrb[0].mxu0 %v216
        %v703 = vpop.f32.mrb[0].mxu0
        %v704 = vadd.f32 0.0, %v703
        %v705 = vpop.f32.mrb[0].mxu0
        %v706 = vadd.f32 0.0, %v705
        %707 = vmatprep.mubr.f32.mxu0 %v219
        %708 = vmatmul.mubr.f32.gmra.mrb[0].mxu0 %v218
        %v709 = vpop.f32.mrb[0].mxu0
        %v710 = vadd.f32 0.0, %v709
        %v711 = vpop.f32.mrb[0].mxu0
        %v712 = vadd.f32 0.0, %v711
        %713 = vmatprep.mubr.f32.mxu0 %v221
        %714 = vmatmul.mubr.f32.gmra.mrb[0].mxu0 %v220
        %v715 = vpop.f32.mrb[0].mxu0
        %v716 = vadd.f32 0.0, %v715
        %v717 = vpop.f32.mrb[0].mxu0
        %v718 = vadd.f32 0.0, %v717
        %719 = vmatprep.mubr.f32.mxu0 %v223
        %720 = vmatmul.mubr.f32.gmra.mrb[0].mxu0 %v222
        %v721 = vpop.f32.mrb[0].mxu0
        %v722 = vadd.f32 0.0, %v721
        %v723 = vpop.f32.mrb[0].mxu0
        %v724 = vadd.f32 0.0, %v723
        %725 = vmatprep.mubr.f32.mxu0 %v225
        %726 = vmatmul.mubr.f32.gmra.mrb[0].mxu0 %v224
        %v727 = vpop.f32.mrb[0].mxu0
        %v728 = vadd.f32 0.0, %v727
        %v729 = vpop.f32.mrb[0].mxu0
        %v730 = vadd.f32 0.0, %v729
        %731 = vmatprep.mubr.f32.mxu0 %v227
        %732 = vmatmul.mubr.f32.gmra.mrb[0].mxu0 %v226
        %v733 = vpop.f32.mrb[0].mxu0
        %v734 = vadd.f32 0.0, %v733
        %v735 = vpop.f32.mrb[0].mxu0
        %v736 = vadd.f32 0.0, %v735
        %737 = vmatprep.mubr.f32.mxu0 %v229
        %738 = vmatmul.mubr.f32.gmra.mrb[0].mxu0 %v228
        %v739 = vpop.f32.mrb[0].mxu0
        %v740 = vadd.f32 0.0, %v739
        %v741 = vpop.f32.mrb[0].mxu0
        %v742 = vadd.f32 0.0, %v741
        %743 = vdwg.mxu0
        %744 = vmatprep.subr.mxu0 %v235
        %745 = vmatpush1.msra.mxu0 %v234
        %746 = vmatprep.subr.mxu0 %v241
        %747 = vmatpush1.msra.mxu0 %v240
        %748 = vmatprep.subr.mxu0 %v247
        %749 = vmatpush1.msra.mxu0 %v246
        %750 = vmatprep.subr.mxu0 %v253
        %751 = vmatpush1.msra.mxu0 %v252
        %752 = vmatprep.subr.mxu0 %v259
        %753 = vmatpush1.msra.mxu0 %v258
        %754 = vmatprep.subr.mxu0 %v265
        %755 = vmatpush1.msra.mxu0 %v264
        %756 = vmatprep.subr.mxu0 %v271
        %757 = vmatpush1.msra.mxu0 %v270
        %758 = vmatprep.subr.mxu0 %v277
        %759 = vmatpush1.msra.mxu0 %v276
        %760 = vmatprep.subr.mxu0 %v283
        %761 = vmatpush1.msra.mxu0 %v282
        %762 = vmatprep.subr.mxu0 %v289
        %763 = vmatpush1.msra.mxu0 %v288
        %764 = vmatprep.subr.mxu0 %v295
        %765 = vmatpush1.msra.mxu0 %v294
        %766 = vmatprep.subr.mxu0 %v301
        %767 = vmatpush1.msra.mxu0 %v300
        %768 = vmatprep.subr.mxu0 %v307
        %769 = vmatpush1.msra.mxu0 %v306
        %770 = vmatprep.subr.mxu0 %v313
        %771 = vmatpush1.msra.mxu0 %v312
        %772 = vmatprep.subr.mxu0 %v319
        %773 = vmatpush1.msra.mxu0 %v318
        %774 = vmatprep.subr.mxu0 %v325
        %775 = vmatpush1.msra.mxu0 %v324
        %776 = vmatprep.subr.mxu0 %v331
        %777 = vmatpush1.msra.mxu0 %v330
        %778 = vmatprep.subr.mxu0 %v337
        %779 = vmatpush1.msra.mxu0 %v336
        %780 = vmatprep.subr.mxu0 %v343
        %781 = vmatpush1.msra.mxu0 %v342
        %782 = vmatprep.subr.mxu0 %v349
        %783 = vmatpush1.msra.mxu0 %v348
        %784 = vmatprep.subr.mxu0 %v355
        %785 = vmatpush1.msra.mxu0 %v354
        %786 = vmatprep.subr.mxu0 %v361
        %787 = vmatpush1.msra.mxu0 %v360
        %788 = vmatprep.subr.mxu0 %v367
        %789 = vmatpush1.msra.mxu0 %v366
        %790 = vmatprep.subr.mxu0 %v373
        %791 = vmatpush1.msra.mxu0 %v372
        %792 = vmatprep.subr.mxu0 %v379
        %793 = vmatpush1.msra.mxu0 %v378
        %794 = vmatprep.subr.mxu0 %v385
        %795 = vmatpush1.msra.mxu0 %v384
        %796 = vmatprep.subr.mxu0 %v391
        %797 = vmatpush1.msra.mxu0 %v390
        %798 = vmatprep.subr.mxu0 %v397
        %799 = vmatpush1.msra.mxu0 %v396
        %800 = vmatprep.subr.mxu0 %v403
        %801 = vmatpush1.msra.mxu0 %v402
        %802 = vmatprep.subr.mxu0 %v409
        %803 = vmatpush1.msra.mxu0 %v408
        %804 = vmatprep.subr.mxu0 %v415
        %805 = vmatpush1.msra.mxu0 %v414
        %806 = vmatprep.subr.mxu0 %v421
        %807 = vmatpush1.msra.mxu0 %v420
        %808 = vmatprep.mubr.f32.mxu0 %v199
        %809 = vmatmul.mubr.f32.gmra.mrb[0].mxu0 %v198
        %v810 = vpop.f32.mrb[0].mxu0
        %v811 = vadd.f32 0.0, %v810
        %v812 = vpop.f32.mrb[0].mxu0
        %v813 = vadd.f32 0.0, %v812
        %814 = vmatprep.mubr.f32.mxu0 %v201
        %815 = vmatmul.mubr.f32.gmra.mrb[0].mxu0 %v200
        %v816 = vpop.f32.mrb[0].mxu0
        %v817 = vadd.f32 0.0, %v816
        %v818 = vpop.f32.mrb[0].mxu0
        %v819 = vadd.f32 0.0, %v818
        %820 = vmatprep.mubr.f32.mxu0 %v203
        %821 = vmatmul.mubr.f32.gmra.mrb[0].mxu0 %v202
        %v822 = vpop.f32.mrb[0].mxu0
        %v823 = vadd.f32 0.0, %v822
        %v824 = vpop.f32.mrb[0].mxu0
        %v825 = vadd.f32 0.0, %v824
        %826 = vmatprep.mubr.f32.mxu0 %v205
        %827 = vmatmul.mubr.f32.gmra.mrb[0].mxu0 %v204
        %v828 = vpop.f32.mrb[0].mxu0
        %v829 = vadd.f32 0.0, %v828
        %v830 = vpop.f32.mrb[0].mxu0
        %v831 = vadd.f32 0.0, %v830
        %832 = vmatprep.mubr.f32.mxu0 %v207
        %833 = vmatmul.mubr.f32.gmra.mrb[0].mxu0 %v206
        %v834 = vpop.f32.mrb[0].mxu0
        %v835 = vadd.f32 0.0, %v834
        %v836 = vpop.f32.mrb[0].mxu0
        %v837 = vadd.f32 0.0, %v836
        %838 = vmatprep.mubr.f32.mxu0 %v209
        %839 = vmatmul.mubr.f32.gmra.mrb[0].mxu0 %v208
        %v840 = vpop.f32.mrb[0].mxu0
        %v841 = vadd.f32 0.0, %v840
        %v842 = vpop.f32.mrb[0].mxu0
        %v843 = vadd.f32 0.0, %v842
        %844 = vmatprep.mubr.f32.mxu0 %v211
        %845 = vmatmul.mubr.f32.gmra.mrb[0].mxu0 %v210
        %v846 = vpop.f32.mrb[0].mxu0
        %v847 = vadd.f32 0.0, %v846
        %v848 = vpop.f32.mrb[0].mxu0
        %v849 = vadd.f32 0.0, %v848
        %850 = vmatprep.mubr.f32.mxu0 %v213
        %851 = vmatmul.mubr.f32.gmra.mrb[0].mxu0 %v212
        %v852 = vpop.f32.mrb[0].mxu0
        %v853 = vadd.f32 0.0, %v852
        %v854 = vpop.f32.mrb[0].mxu0
        %v855 = vadd.f32 0.0, %v854
        %856 = vmatprep.mubr.f32.mxu0 %v215
        %857 = vmatmul.mubr.f32.gmra.mrb[0].mxu0 %v214
        %v858 = vpop.f32.mrb[0].mxu0
        %v859 = vadd.f32 0.0, %v858
        %v860 = vpop.f32.mrb[0].mxu0
        %v861 = vadd.f32 0.0, %v860
        %862 = vmatprep.mubr.f32.mxu0 %v217
        %863 = vmatmul.mubr.f32.gmra.mrb[0].mxu0 %v216
        %v864 = vpop.f32.mrb[0].mxu0
        %v865 = vadd.f32 0.0, %v864
        %v866 = vpop.f32.mrb[0].mxu0
        %v867 = vadd.f32 0.0, %v866
        %868 = vmatprep.mubr.f32.mxu0 %v219
        %869 = vmatmul.mubr.f32.gmra.mrb[0].mxu0 %v218
        %v870 = vpop.f32.mrb[0].mxu0
        %v871 = vadd.f32 0.0, %v870
        %v872 = vpop.f32.mrb[0].mxu0
        %v873 = vadd.f32 0.0, %v872
        %874 = vmatprep.mubr.f32.mxu0 %v221
        %875 = vmatmul.mubr.f32.gmra.mrb[0].mxu0 %v220
        %v876 = vpop.f32.mrb[0].mxu0
        %v877 = vadd.f32 0.0, %v876
        %v878 = vpop.f32.mrb[0].mxu0
        %v879 = vadd.f32 0.0, %v878
        %880 = vmatprep.mubr.f32.mxu0 %v223
        %881 = vmatmul.mubr.f32.gmra.mrb[0].mxu0 %v222
        %v882 = vpop.f32.mrb[0].mxu0
        %v883 = vadd.f32 0.0, %v882
        %v884 = vpop.f32.mrb[0].mxu0
        %v885 = vadd.f32 0.0, %v884
        %886 = vmatprep.mubr.f32.mxu0 %v225
        %887 = vmatmul.mubr.f32.gmra.mrb[0].mxu0 %v224
        %v888 = vpop.f32.mrb[0].mxu0
        %v889 = vadd.f32 0.0, %v888
        %v890 = vpop.f32.mrb[0].mxu0
        %v891 = vadd.f32 0.0, %v890
        %892 = vmatprep.mubr.f32.mxu0 %v227
        %893 = vmatmul.mubr.f32.gmra.mrb[0].mxu0 %v226
        %v894 = vpop.f32.mrb[0].mxu0
        %v895 = vadd.f32 0.0, %v894
        %v896 = vpop.f32.mrb[0].mxu0
        %v897 = vadd.f32 0.0, %v896
        %898 = vmatprep.mubr.f32.mxu0 %v229
        %899 = vmatmul.mubr.f32.gmra.mrb[0].mxu0 %v228
        %v900 = vpop.f32.mrb[0].mxu0
        %v901 = vadd.f32 0.0, %v900
        %v902 = vpop.f32.mrb[0].mxu0
        %v903 = vadd.f32 0.0, %v902
        %904 = vdwg.mxu0
        %905 = vst [vmem:[%s195] sm:$0xff] %v489
        %906 = vst [vmem:[%s195 + $0x8] sm:$0xff] %v491
        %907 = vst [vmem:[%s195 + $0x10] sm:$0xff] %v650
        %908 = vst [vmem:[%s195 + $0x18] sm:$0xff] %v652
        %909 = vst [vmem:[%s195 + $0x20] sm:$0xff] %v811
        %910 = vst [vmem:[%s195 + $0x28] sm:$0xff] %v813
        %911 = vst [vmem:[%s195 + $0x30] sm:$0xff] %v495
        %912 = vst [vmem:[%s195 + $0x38] sm:$0xff] %v497
        %913 = vst [vmem:[%s195 + $0x40] sm:$0xff] %v656
        %914 = vst [vmem:[%s195 + $0x48] sm:$0xff] %v658
        %915 = vst [vmem:[%s195 + $0x50] sm:$0xff] %v817
        %916 = vst [vmem:[%s195 + $0x58] sm:$0xff] %v819
        %917 = vst [vmem:[%s195 + $0x60] sm:$0xff] %v501
        %918 = vst [vmem:[%s195 + $0x68] sm:$0xff] %v503
        %919 = vst [vmem:[%s195 + $0x70] sm:$0xff] %v662
        %920 = vst [vmem:[%s195 + $0x78] sm:$0xff] %v664
        %921 = vst [vmem:[%s195 + $0x80] sm:$0xff] %v823
        %922 = vst [vmem:[%s195 + $0x88] sm:$0xff] %v825
        %923 = vst [vmem:[%s195 + $0x90] sm:$0xff] %v507
        %924 = vst [vmem:[%s195 + $0x98] sm:$0xff] %v509
        %925 = vst [vmem:[%s195 + $0xa0] sm:$0xff] %v668
        %926 = vst [vmem:[%s195 + $0xa8] sm:$0xff] %v670
        %927 = vst [vmem:[%s195 + $0xb0] sm:$0xff] %v829
        %928 = vst [vmem:[%s195 + $0xb8] sm:$0xff] %v831
        %929 = vst [vmem:[%s195 + $0xc0] sm:$0xff] %v513
        %930 = vst [vmem:[%s195 + $0xc8] sm:$0xff] %v515
        %931 = vst [vmem:[%s195 + $0xd0] sm:$0xff] %v674
        %932 = vst [vmem:[%s195 + $0xd8] sm:$0xff] %v676
        %933 = vst [vmem:[%s195 + $0xe0] sm:$0xff] %v835
        %934 = vst [vmem:[%s195 + $0xe8] sm:$0xff] %v837
        %935 = vst [vmem:[%s195 + $0xf0] sm:$0xff] %v519
        %936 = vst [vmem:[%s195 + $0xf8] sm:$0xff] %v521
        %937 = vst [vmem:[%s195 + $0x100] sm:$0xff] %v680
        %938 = vst [vmem:[%s195 + $0x108] sm:$0xff] %v682
        %939 = vst [vmem:[%s195 + $0x110] sm:$0xff] %v841
        %940 = vst [vmem:[%s195 + $0x118] sm:$0xff] %v843
        %941 = vst [vmem:[%s195 + $0x120] sm:$0xff] %v525
        %942 = vst [vmem:[%s195 + $0x128] sm:$0xff] %v527
        %943 = vst [vmem:[%s195 + $0x130] sm:$0xff] %v686
        %944 = vst [vmem:[%s195 + $0x138] sm:$0xff] %v688
        %945 = vst [vmem:[%s195 + $0x140] sm:$0xff] %v847
        %946 = vst [vmem:[%s195 + $0x148] sm:$0xff] %v849
        %947 = vst [vmem:[%s195 + $0x150] sm:$0xff] %v531
        %948 = vst [vmem:[%s195 + $0x158] sm:$0xff] %v533
        %949 = vst [vmem:[%s195 + $0x160] sm:$0xff] %v692
        %950 = vst [vmem:[%s195 + $0x168] sm:$0xff] %v694
        %951 = vst [vmem:[%s195 + $0x170] sm:$0xff] %v853
        %952 = vst [vmem:[%s195 + $0x178] sm:$0xff] %v855
        %953 = vst [vmem:[%s195 + $0x180] sm:$0xff] %v537
        %954 = vst [vmem:[%s195 + $0x188] sm:$0xff] %v539
        %955 = vst [vmem:[%s195 + $0x190] sm:$0xff] %v698
        %956 = vst [vmem:[%s195 + $0x198] sm:$0xff] %v700
        %957 = vst [vmem:[%s195 + $0x1a0] sm:$0xff] %v859
        %958 = vst [vmem:[%s195 + $0x1a8] sm:$0xff] %v861
        %959 = vst [vmem:[%s195 + $0x1b0] sm:$0xff] %v543
        %960 = vst [vmem:[%s195 + $0x1b8] sm:$0xff] %v545
        %961 = vst [vmem:[%s195 + $0x1c0] sm:$0xff] %v704
        %962 = vst [vmem:[%s195 + $0x1c8] sm:$0xff] %v706
        %963 = vst [vmem:[%s195 + $0x1d0] sm:$0xff] %v865
        %964 = vst [vmem:[%s195 + $0x1d8] sm:$0xff] %v867
        %965 = vst [vmem:[%s195 + $0x1e0] sm:$0xff] %v549
        %966 = vst [vmem:[%s195 + $0x1e8] sm:$0xff] %v551
        %967 = vst [vmem:[%s195 + $0x1f0] sm:$0xff] %v710
        %968 = vst [vmem:[%s195 + $0x1f8] sm:$0xff] %v712
        %969 = vst [vmem:[%s195 + $0x200] sm:$0xff] %v871
        %970 = vst [vmem:[%s195 + $0x208] sm:$0xff] %v873
        %971 = vst [vmem:[%s195 + $0x210] sm:$0xff] %v555
        %972 = vst [vmem:[%s195 + $0x218] sm:$0xff] %v557
        %973 = vst [vmem:[%s195 + $0x220] sm:$0xff] %v716
        %974 = vst [vmem:[%s195 + $0x228] sm:$0xff] %v718
        %975 = vst [vmem:[%s195 + $0x230] sm:$0xff] %v877
        %976 = vst [vmem:[%s195 + $0x238] sm:$0xff] %v879
        %977 = vst [vmem:[%s195 + $0x240] sm:$0xff] %v561
        %978 = vst [vmem:[%s195 + $0x248] sm:$0xff] %v563
        %979 = vst [vmem:[%s195 + $0x250] sm:$0xff] %v722
        %980 = vst [vmem:[%s195 + $0x258] sm:$0xff] %v724
        %981 = vst [vmem:[%s195 + $0x260] sm:$0xff] %v883
        %982 = vst [vmem:[%s195 + $0x268] sm:$0xff] %v885
        %983 = vst [vmem:[%s195 + $0x270] sm:$0xff] %v567
        %984 = vst [vmem:[%s195 + $0x278] sm:$0xff] %v569
        %985 = vst [vmem:[%s195 + $0x280] sm:$0xff] %v728
        %986 = vst [vmem:[%s195 + $0x288] sm:$0xff] %v730
        %987 = vst [vmem:[%s195 + $0x290] sm:$0xff] %v889
        %988 = vst [vmem:[%s195 + $0x298] sm:$0xff] %v891
        %989 = vst [vmem:[%s195 + $0x2a0] sm:$0xff] %v573
        %990 = vst [vmem:[%s195 + $0x2a8] sm:$0xff] %v575
        %991 = vst [vmem:[%s195 + $0x2b0] sm:$0xff] %v734
        %992 = vst [vmem:[%s195 + $0x2b8] sm:$0xff] %v736
        %993 = vst [vmem:[%s195 + $0x2c0] sm:$0xff] %v895
        %994 = vst [vmem:[%s195 + $0x2c8] sm:$0xff] %v897
        %995 = vst [vmem:[%s195 + $0x2d0] sm:$0xff] %v579
        %996 = vst [vmem:[%s195 + $0x2d8] sm:$0xff] %v581
        %997 = vst [vmem:[%s195 + $0x2e0] sm:$0xff] %v740
        %998 = vst [vmem:[%s195 + $0x2e8] sm:$0xff] %v742
        %999 = vst [vmem:[%s195 + $0x2f0] sm:$0xff] %v901
        %1000 = vst [vmem:[%s195 + $0x2f8] sm:$0xff] %v903
        %s1001 = sand.u32 %s91, 1
        %s1002 = scalar_lea.sflag [#allocation4], %s1001
        %s1003 = sand.u32 %s91, 1
        %s1004 = smul.addr %s1003, 768
        %s1005 = scalar_lea.vmem [#allocation7], %s1004
        // Predicated region
        $region37: #{tpu_custom_call.1} parent=27 // pred_check
          %p1006 = pneg %p101
        $region38: #{tpu_custom_call.1} parent=27 // pred_check_branch
          %1008 = sbr.rel (%p1006) target = $region40
        $region39: #{tpu_custom_call.1} parent=27 // pred_region
          %s1009 = smul.u32 16, %s25
          %s1011 = ssub.s32 12288, 12288
          %1012 = vsyncadd %s1002, %s1011
          %s1013 = smul.addr %s1009, 6
          %s1014 = smul.addr %s24, 96
          %s1015 = sadd.s32 %s1013, %s1014
          %s1016 = smul.addr %s1015, 128
          %s1017 = scalar_lea.hbm %s2, %s1016
          %s1018 = sshll.u32 %s1005, 4
          %s1019 = int_to_ptr.vmem [resolvable:$true] %s1018
          %1024 = dma.vmem_to_hbm [thread:$0]  %s1019, 12288, %s1017, %s1002, 768, 768, 48
        $region40: #{tpu_custom_call.1} parent=27 // pred_fallthru
          _
      $region28: #{tpu_custom_call.1} parent=5 // pred_fallthru
        _
      %p1025 = scmp.le.s32.totalorder 2, %s15
      // Predicated region
      $region41: #{tpu_custom_call.1} parent=5 // pred_check
        %p1026 = pneg %p1025
      $region42: #{tpu_custom_call.1} parent=5 // pred_check_branch
        %1028 = sbr.rel (%p1026) target = $region44
      $region43: #{tpu_custom_call.1} parent=5 // pred_region
        %s1029 = ssub.s32 %s15, 2
        // Predicated region
        $region45: #{tpu_custom_call.1} parent=43 // pred_check
          %p1030 = pneg %p107
        $region46: #{tpu_custom_call.1} parent=43 // pred_check_branch
          %1032 = sbr.rel (%p1030) target = $region48
        $region47: #{tpu_custom_call.1} parent=43 // pred_region
          %s1033 = sand.u32 %s92, 1
          %s1034 = scalar_lea.sflag [#allocation4], %s1033
          %s1035 = sand.u32 %s92, 1
          %s1036 = smul.addr %s1035, 768
          %s1037 = scalar_lea.vmem [#allocation7], %s1036
          %1038 = dma.done %s1034, 12288
        $region48: #{tpu_custom_call.1} parent=43 // pred_fallthru
          _
      $region44: #{tpu_custom_call.1} parent=5 // pred_fallthru
        _
    $region6: #{tpu_custom_call.1} parent=1 // loop_footer
      %s19 = sadd.s32 1, %s15
    $region7: #{tpu_custom_call.1} parent=1 // loop_footer_branch
      %14 = sbr.rel target = $region3
    $region8: #{tpu_custom_call.1} parent=1 // loop_exit
      _
    %1039 = vsyncpa [#allocation3], 1
    %s1040 = scalar_lea.sflag [#allocation3], 1
    %1041 = vsyncpa %s1040, 1
    %1042 = vsyncpa [#allocation6], 1
    %1043 = vsyncpa [#allocation4], 1
    %s1044 = scalar_lea.sflag [#allocation4], 1
    %1045 = vsyncpa %s1044, 1

</llo_original>
